<compile_context>
chip_gen: v5e
topology: v5e:2x2
jax: 0.10.0
libtpu: 0.0.40
codegen_flags: <defaults>
</compile_context>

<pallas_src>
import functools

import jax
import jax.numpy as jnp
from jax.experimental import pallas as pl
from jax.experimental.pallas import tpu as pltpu


def _mlp_kernel(x_ref, w1_ref, b1_ref, w2_ref, b2_ref, o_ref):
    # x_ref: (TM, W) tile of folded rows; w1/w2: (W, W) block-diagonal bf16;
    # b1/b2: (1, W) f32.  bf16 MXU operands, f32 accumulation, ReLU/sigmoid in
    # f32, cast only on the final store.
    x = x_ref[...].astype(jnp.bfloat16)
    h = jnp.dot(x, w1_ref[...], preferred_element_type=jnp.float32) + b1_ref[...]
    h = jnp.maximum(h, 0.0)                                   # ReLU (f32)
    y = jnp.dot(h.astype(jnp.bfloat16), w2_ref[...],
                preferred_element_type=jnp.float32) + b2_ref[...]
    o_ref[...] = jax.nn.sigmoid(y).astype(o_ref.dtype)


def _vmem_capacity_bytes():
    # Generation-aware budget: 128 MiB on v5e/v6e, 64 MiB per TensorCore on v7x.
    try:
        return int(pltpu.get_tpu_info().vmem_capacity_bytes)
    except Exception:
        return 64 * 1024 * 1024   # conservative fallback (v7x per-core VMEM)


@functools.partial(jax.jit, static_argnames=("tile_m", "fold_lanes"))
def rgb_atten_fc(x, w1, b1, w2, b2, *, tile_m=4096, fold_lanes=128):
    """x: (..., size) (NCDHW in PyTorch); w1/w2: (in, out); b1/b2: (1, size).

    tile_m counts FOLDED (fold_lanes-wide) rows; sweep 1024..8192 per chip gen.
    """
    size = x.shape[-1]
    orig_shape = x.shape
    x2 = x.reshape(-1, size)
    m = x2.shape[0]

    # Parameters are tiny: cast once (weights -> bf16 for the MXU, biases -> f32
    # so they are added after the f32 accumulation).
    w1c = w1.astype(jnp.bfloat16)
    w2c = w2.astype(jnp.bfloat16)
    b1c = b1.astype(jnp.float32).reshape(1, size)
    b2c = b2.astype(jnp.float32).reshape(1, size)

    # Lane-dense folding factor.
    # TODO(synk): pass fold_lanes=256 on v6e/v7x to fill the 256x256 MXU if
    # profiling shows the MXU is still co-dominant after the bf16 change
    # (keep 128 on v5e's 128x128 MXUs).
    fold = fold_lanes // size if (size <= fold_lanes and fold_lanes % size == 0) else 1
    m_main = (m // fold) * fold            # fold-divisible prefix (no jnp.pad copy)

    outs = []
    if m_main > 0:
        width = size * fold
        mf = m_main // fold
        xf = x2[:m_main].reshape(mf, width)        # free reshape (contiguous rows)

        if fold > 1:
            eye = jnp.eye(fold, dtype=jnp.bfloat16)
            w1f = jnp.kron(eye, w1c)               # (width, width) block-diagonal
            w2f = jnp.kron(eye, w2c)
            b1f = jnp.tile(b1c, (1, fold))         # (1, width) f32
            b2f = jnp.tile(b2c, (1, fold))
        else:
            w1f, w2f, b1f, b2f = w1c, w2c, b1c, b2c

        # ---- Tile selection: generation-aware VMEM cap + >=4 grid steps ----
        vmem_cap = _vmem_capacity_bytes()
        budget = int(vmem_cap * 0.6)               # headroom for compiler temps/spills
        x_bytes = jnp.dtype(xf.dtype).itemsize
        o_bytes = jnp.dtype(x.dtype).itemsize
        # Double-buffered W1/W2 (bf16) + b1/b2 (f32):
        w_bytes = 2 * (2 * width * width * 2 + 2 * width * 4)
        # Double-buffered in/out tiles + f32 h/y matmul intermediates, per row:
        per_row = width * (2 * x_bytes + 2 * o_bytes + 2 * 4)
        max_tile = max(8, ((budget - w_bytes) // per_row) // 8 * 8)

        if mf <= 8:
            tile = mf                              # full-extent block (tiny problem)
        else:
            tile = min(tile_m, mf, max_tile)
            if mf >= 64:
                # >=4 grid steps: keeps DMA/compute overlapped within each core
                # and gives both v7x TensorCores >=2 pipelined steps each.
                tile = min(tile, pl.cdiv(mf, 4))
            tile = max(8, (tile // 8) * 8)         # sublane-aligned tiles
        grid = (pl.cdiv(mf, tile),)
        vmem_limit = min(int(vmem_cap * 0.9),
                         max(2 * (w_bytes + tile * per_row), 32 * 1024 * 1024))

        out_main = pl.pallas_call(
            _mlp_kernel,
            out_shape=jax.ShapeDtypeStruct((mf, width), x.dtype),
            grid_spec=pltpu.PrefetchScalarGridSpec(
                num_scalar_prefetch=0,
                grid=grid,
                in_specs=[
                    pl.BlockSpec((tile, width), lambda i: (i, 0)),    # x rows (pipelined)
                    pl.BlockSpec((width, width), lambda i: (0, 0)),   # W1 (VMEM-resident)
                    pl.BlockSpec((1, width), lambda i: (0, 0)),       # b1 (VMEM-resident)
                    pl.BlockSpec((width, width), lambda i: (0, 0)),   # W2 (VMEM-resident)
                    pl.BlockSpec((1, width), lambda i: (0, 0)),       # b2 (VMEM-resident)
                ],
                out_specs=pl.BlockSpec((tile, width), lambda i: (i, 0)),
            ),
            compiler_params=pltpu.CompilerParams(
                dimension_semantics=("parallel",),
                vmem_limit_bytes=vmem_limit,
            ),
        )(xf, w1f, b1f, w2f, b2f)
        outs.append(out_main.reshape(m_main, size))

    if m_main < m:
        # <= fold-1 leftover rows: trivial XLA epilogue.  Avoids re-writing the
        # whole activation tensor with jnp.pad just to round up to `fold`; the
        # only extra cost is one output-side concat on the rare ragged path.
        xt = x2[m_main:].astype(jnp.float32)
        ht = jnp.maximum(xt @ w1c.astype(jnp.float32) + b1c, 0.0)
        yt = jax.nn.sigmoid(ht @ w2c.astype(jnp.float32) + b2c)
        outs.append(yt.astype(x.dtype))

    out = outs[0] if len(outs) == 1 else jnp.concatenate(outs, axis=0)
    return out.reshape(orig_shape)


def init_params(key, size):
    """Deterministic PyTorch-style Linear init: U(-1/sqrt(in), 1/sqrt(in))."""
    k1, k2, k3, k4 = jax.random.split(key, 4)
    bound = 1.0 / jnp.sqrt(jnp.float32(size))
    # Stored as (in, out) so the kernel does x @ W (== x @ W_pt.T).
    w1 = jax.random.uniform(k1, (size, size), jnp.float32, -bound, bound)
    b1 = jax.random.uniform(k2, (1, size), jnp.float32, -bound, bound)
    w2 = jax.random.uniform(k3, (size, size), jnp.float32, -bound, bound)
    b2 = jax.random.uniform(k4, (1, size), jnp.float32, -bound, bound)
    return w1, b1, w2, b2


def reference(x, w1, b1, w2, b2):
    # AvgPool3d(kernel_size=1) is identity.
    h = jnp.maximum(x @ w1 + b1[0], 0.0)
    return jax.nn.sigmoid(h @ w2 + b2[0])


if __name__ == "__main__":
    key = jax.random.PRNGKey(0)
    kx, kp, kr = jax.random.split(key, 3)

    # NCDHW input for AvgPool3d (identity at kernel_size=1); last dim == size
    # (the Linear feature axis).  bf16 activations exercise the recommended
    # low-HBM-traffic path; the kernel still accumulates in f32.
    N, C, D, H, SIZE = 2, 4, 4, 25, 16
    x = jax.random.normal(kx, (N, C, D, H, SIZE), jnp.float32).astype(jnp.bfloat16)
    w1, b1, w2, b2 = init_params(kp, SIZE)

    out = jax.block_until_ready(rgb_atten_fc(x, w1, b1, w2, b2))
    ref = reference(x.astype(jnp.float32), w1, b1, w2, b2)
    assert out.shape == x.shape and out.dtype == x.dtype
    # bf16 operands with f32 accumulation: loosened tolerance vs. the f32 reference.
    assert jnp.allclose(out.astype(jnp.float32), ref, atol=2e-2, rtol=2e-2), "mismatch (main)"

    # Ragged path: row count (27) not divisible by fold=8 -> leftover rows go
    # through the XLA epilogue; also exercises a <8-row full-extent tile.
    xr = jax.random.normal(kr, (1, 3, 3, 3, SIZE), jnp.float32).astype(jnp.bfloat16)
    outr = jax.block_until_ready(rgb_atten_fc(xr, w1, b1, w2, b2))
    refr = reference(xr.astype(jnp.float32), w1, b1, w2, b2)
    assert outr.shape == xr.shape
    assert jnp.allclose(outr.astype(jnp.float32), refr, atol=2e-2, rtol=2e-2), "mismatch (ragged)"

    print("KERNEL_OK")
</pallas_src>

<mosaic_0001>
module attributes {stable_mosaic.version = 11 : i64} {
  func.func @_mlp_kernel(%arg0: i32, %arg1: memref<24x128xbf16, #tpu.memory_space<vmem>>, %arg2: memref<128x128xbf16, #tpu.memory_space<vmem>>, %arg3: memref<1x128xf32, #tpu.memory_space<vmem>>, %arg4: memref<128x128xbf16, #tpu.memory_space<vmem>>, %arg5: memref<1x128xf32, #tpu.memory_space<vmem>>, %arg6: memref<24x128xbf16, #tpu.memory_space<vmem>>) attributes {dimension_semantics = [#tpu.dimension_semantics<parallel>], iteration_bounds = array<i64: 5>, scalar_prefetch = 0 : i64, scratch_operands = 0 : i64, tpu.core_type = #tpu.core_type<tc>, window_params = [{transform_indices = @transform_0, window_bounds = array<i64: 24, 128>}, {pipeline_mode = #tpu.pipeline_mode<synchronous>, transform_indices = @transform_1, window_bounds = array<i64: 128, 128>}, {pipeline_mode = #tpu.pipeline_mode<synchronous>, transform_indices = @transform_2, window_bounds = array<i64: 1, 128>}, {pipeline_mode = #tpu.pipeline_mode<synchronous>, transform_indices = @transform_3, window_bounds = array<i64: 128, 128>}, {pipeline_mode = #tpu.pipeline_mode<synchronous>, transform_indices = @transform_4, window_bounds = array<i64: 1, 128>}, {transform_indices = @transform_5, window_bounds = array<i64: 24, 128>}]} {
    %c0 = arith.constant 0 : index
    %c0_0 = arith.constant 0 : index
    %0 = vector.load %arg1[%c0, %c0_0] : memref<24x128xbf16, #tpu.memory_space<vmem>>, vector<24x128xbf16>
    %c0_1 = arith.constant 0 : index
    %c0_2 = arith.constant 0 : index
    %1 = vector.load %arg2[%c0_1, %c0_2] : memref<128x128xbf16, #tpu.memory_space<vmem>>, vector<128x128xbf16>
    %cst = arith.constant dense<0.000000e+00> : vector<24x128xf32>
    %2 = tpu.matmul %0, %1, %cst {dimension_numbers = #tpu.dot_dimension_numbers<[1], [0], [0], [1], [0, 0, 1, 1], [], []>} : vector<24x128xbf16>, vector<128x128xbf16>, vector<24x128xf32> -> vector<24x128xf32>
    %c0_3 = arith.constant 0 : index
    %c0_4 = arith.constant 0 : index
    %3 = vector.load %arg3[%c0_3, %c0_4] : memref<1x128xf32, #tpu.memory_space<vmem>>, vector<1x128xf32>
    %4 = vector.broadcast %3 : vector<1x128xf32> to vector<24x128xf32>
    %5 = arith.addf %2, %4 : vector<24x128xf32>
    %cst_5 = arith.constant 0.000000e+00 : f32
    %6 = vector.broadcast %cst_5 : f32 to vector<24x128xf32>
    %7 = arith.maximumf %5, %6 : vector<24x128xf32>
    %8 = arith.truncf %7 : vector<24x128xf32> to vector<24x128xbf16>
    %c0_6 = arith.constant 0 : index
    %c0_7 = arith.constant 0 : index
    %9 = vector.load %arg4[%c0_6, %c0_7] : memref<128x128xbf16, #tpu.memory_space<vmem>>, vector<128x128xbf16>
    %cst_8 = arith.constant dense<0.000000e+00> : vector<24x128xf32>
    %10 = tpu.matmul %8, %9, %cst_8 {dimension_numbers = #tpu.dot_dimension_numbers<[1], [0], [0], [1], [0, 0, 1, 1], [], []>} : vector<24x128xbf16>, vector<128x128xbf16>, vector<24x128xf32> -> vector<24x128xf32>
    %c0_9 = arith.constant 0 : index
    %c0_10 = arith.constant 0 : index
    %11 = vector.load %arg5[%c0_9, %c0_10] : memref<1x128xf32, #tpu.memory_space<vmem>>, vector<1x128xf32>
    %12 = vector.broadcast %11 : vector<1x128xf32> to vector<24x128xf32>
    %13 = arith.addf %10, %12 : vector<24x128xf32>
    %14 = arith.negf %13 : vector<24x128xf32>
    %15 = math.exp %14 : vector<24x128xf32>
    %cst_11 = arith.constant 1.000000e+00 : f32
    %16 = vector.broadcast %cst_11 : f32 to vector<24x128xf32>
    %17 = arith.addf %16, %15 : vector<24x128xf32>
    %18 = arith.divf %16, %17 : vector<24x128xf32>
    %19 = arith.truncf %18 : vector<24x128xf32> to vector<24x128xbf16>
    %c0_12 = arith.constant 0 : index
    %c0_13 = arith.constant 0 : index
    %20 = vector.load %arg6[%c0_12, %c0_13] : memref<24x128xbf16, #tpu.memory_space<vmem>>, vector<24x128xbf16>
    tpu.vector_store %arg6[%c0_12, %c0_13], %19 {strides = array<i32>} : memref<24x128xbf16, #tpu.memory_space<vmem>>, vector<24x128xbf16>,
    return
  }
  func.func @transform_0(%arg0: i32) -> (i32, i32) {
    %c0_i32 = arith.constant 0 : i32
    %c0_i32_0 = arith.constant 0 : i32
    return %arg0, %c0_i32 : i32, i32
  }
  func.func @transform_1(%arg0: i32) -> (i32, i32) {
    %c0_i32 = arith.constant 0 : i32
    %c0_i32_0 = arith.constant 0 : i32
    %c0_i32_1 = arith.constant 0 : i32
    return %c0_i32, %c0_i32_0 : i32, i32
  }
  func.func @transform_2(%arg0: i32) -> (i32, i32) {
    %c0_i32 = arith.constant 0 : i32
    %c0_i32_0 = arith.constant 0 : i32
    %c0_i32_1 = arith.constant 0 : i32
    return %c0_i32, %c0_i32_0 : i32, i32
  }
  func.func @transform_3(%arg0: i32) -> (i32, i32) {
    %c0_i32 = arith.constant 0 : i32
    %c0_i32_0 = arith.constant 0 : i32
    %c0_i32_1 = arith.constant 0 : i32
    return %c0_i32, %c0_i32_0 : i32, i32
  }
  func.func @transform_4(%arg0: i32) -> (i32, i32) {
    %c0_i32 = arith.constant 0 : i32
    %c0_i32_0 = arith.constant 0 : i32
    %c0_i32_1 = arith.constant 0 : i32
    return %c0_i32, %c0_i32_0 : i32, i32
  }
  func.func @transform_5(%arg0: i32) -> (i32, i32) {
    %c0_i32 = arith.constant 0 : i32
    %c0_i32_0 = arith.constant 0 : i32
    return %arg0, %c0_i32 : i32, i32
  }
}

</mosaic_0001>

<llo_original>
// kernel: rgb_atten_fc.1
$region0: #{rgb_atten_fc.1}
  #allocation0 [shape = 'u32[]', space=smem, size = 0x4, offset = 0x4, fixed_abs, tag = 'smem constant byte address 0x4 - core index']
  #allocation1 [shape = 'u32[72,128]{1,0:T(1,128)}', space=vmem, size = 0x9000, scoped, tag = 'internal scratch']
  %s0 = inlined_call_operand.vmem [shape: bf16[100,128], index: 0, kind: input, shape index: {}]
  %s1 = inlined_call_operand.vmem [shape: bf16[128,128], index: 1, kind: input, shape index: {}]
  %s2 = inlined_call_operand.vmem [shape: f32[1,128], index: 2, kind: input, shape index: {}]
  %s3 = inlined_call_operand.vmem [shape: bf16[128,128], index: 3, kind: input, shape index: {}]
  %s4 = inlined_call_operand.vmem [shape: f32[1,128], index: 4, kind: input, shape index: {}]
  %s5 = inlined_call_operand.vmem [shape: bf16[100,128], index: 5, kind: output, shape index: {}]
  %s6 = sld [smem:[#allocation0]]
  $region97: #{rgb_atten_fc.1} parent=0
    _
  %s8 = ssub.s32 1, %s6
  %s9 = scalar_select 0, %s8, %s6
  $region1: #{rgb_atten_fc.1} parent=0
    #allocation2 [shape = 'u8[12288]{0}', space=vmem, size = 0x3000, scoped, tag = 'output window, operand 0']
    loop: start=0, step=1, limit=7
    $region2: #{rgb_atten_fc.1} parent=1 // loop_pre_header
      _
    $region3: #{rgb_atten_fc.1} parent=1 // loop_header
      %s11 = sphi 0, %s15
      %p12 = scmp.ge.s32.totalorder %s11, 7
      %s21 = sphi 0, %s23
      %s24 = sphi 0, %s21
      %s25 = sphi 0, %s24
      %s41 = sphi 0, %s25
      %s45 = sphi 0, %s45
      %s47 = sphi 0, %s45
      %s48 = sphi 0, %s47
      %s62 = sphi 0, %s48
      %s66 = sphi 0, %s66
      %s68 = sphi 0, %s66
      %s69 = sphi 0, %s68
      %s83 = sphi 0, %s69
      %s87 = sphi 0, %s87
      %s89 = sphi 0, %s87
      %s90 = sphi 0, %s89
      %s104 = sphi 0, %s90
      %s108 = sphi 0, %s108
      %s110 = sphi 0, %s108
      %s111 = sphi 0, %s110
      %s125 = sphi 0, %s111
      %s131 = sphi 0, %s133
      %s134 = sphi 0, %s131
      %s135 = sphi 0, %s134
      %s151 = sphi 0, %s135
    $region4: #{rgb_atten_fc.1} parent=1 // loop_header_branch
      %14 = sbr.rel (%p12) target = $region8
    $region5: #{rgb_atten_fc.1} parent=1 // loop_body
      %s16 = ssub.s32 %s11, 1
      %s17 = ssub.s32 %s11, 2
      %s18 = sadd.s32 %s11, 1
      %s19 = ssub.s32 %s11, %s18
      %p20 = scmp.eq.s32.totalorder %s19, 0
      %s22 = sadd.s32 %s21, 1
      %s23 = scalar_select %p20, %s21, %s22
      %p26 = pneg %p20
      %p27 = scmp.eq.s32.totalorder %s11, 4
      %p28 = por %p26, %p27
      %p29 = scmp.ne.s32.totalorder %s21, %s24
      %p30 = scmp.eq.s32.totalorder %s11, 0
      %p31 = por %p29, %p30
      %p32 = scmp.ne.s32.totalorder %s21, %s24
      %p33 = scmp.eq.s32.totalorder %s16, 4
      %p34 = por %p32, %p33
      %p35 = scmp.ne.s32.totalorder %s24, %s25
      %p36 = scmp.eq.s32.totalorder %s16, 0
      %p37 = por %p35, %p36
      %p38 = scmp.ne.s32.totalorder %s24, %s25
      %p39 = scmp.eq.s32.totalorder %s17, 4
      %p40 = por %p38, %p39
      %p42 = scmp.ne.s32.totalorder %s25, %s41
      %p43 = scmp.eq.s32.totalorder %s17, 0
      %p44 = por %p42, %p43
      %s46 = sadd.s32 %s45, 1
      %p49 = scmp.eq.s32.totalorder %s11, 4
      %p50 = scmp.ne.s32.totalorder %s45, %s47
      %p51 = scmp.eq.s32.totalorder %s11, 0
      %p52 = por %p50, %p51
      %p53 = scmp.ne.s32.totalorder %s45, %s47
      %p54 = scmp.eq.s32.totalorder %s16, 4
      %p55 = por %p53, %p54
      %p56 = scmp.ne.s32.totalorder %s47, %s48
      %p57 = scmp.eq.s32.totalorder %s16, 0
      %p58 = por %p56, %p57
      %p59 = scmp.ne.s32.totalorder %s47, %s48
      %p60 = scmp.eq.s32.totalorder %s17, 4
      %p61 = por %p59, %p60
      %p63 = scmp.ne.s32.totalorder %s48, %s62
      %p64 = scmp.eq.s32.totalorder %s17, 0
      %p65 = por %p63, %p64
      %s67 = sadd.s32 %s66, 1
      %p70 = scmp.eq.s32.totalorder %s11, 4
      %p71 = scmp.ne.s32.totalorder %s66, %s68
      %p72 = scmp.eq.s32.totalorder %s11, 0
      %p73 = por %p71, %p72
      %p74 = scmp.ne.s32.totalorder %s66, %s68
      %p75 = scmp.eq.s32.totalorder %s16, 4
      %p76 = por %p74, %p75
      %p77 = scmp.ne.s32.totalorder %s68, %s69
      %p78 = scmp.eq.s32.totalorder %s16, 0
      %p79 = por %p77, %p78
      %p80 = scmp.ne.s32.totalorder %s68, %s69
      %p81 = scmp.eq.s32.totalorder %s17, 4
      %p82 = por %p80, %p81
      %p84 = scmp.ne.s32.totalorder %s69, %s83
      %p85 = scmp.eq.s32.totalorder %s17, 0
      %p86 = por %p84, %p85
      %s88 = sadd.s32 %s87, 1
      %p91 = scmp.eq.s32.totalorder %s11, 4
      %p92 = scmp.ne.s32.totalorder %s87, %s89
      %p93 = scmp.eq.s32.totalorder %s11, 0
      %p94 = por %p92, %p93
      %p95 = scmp.ne.s32.totalorder %s87, %s89
      %p96 = scmp.eq.s32.totalorder %s16, 4
      %p97 = por %p95, %p96
      %p98 = scmp.ne.s32.totalorder %s89, %s90
      %p99 = scmp.eq.s32.totalorder %s16, 0
      %p100 = por %p98, %p99
      %p101 = scmp.ne.s32.totalorder %s89, %s90
      %p102 = scmp.eq.s32.totalorder %s17, 4
      %p103 = por %p101, %p102
      %p105 = scmp.ne.s32.totalorder %s90, %s104
      %p106 = scmp.eq.s32.totalorder %s17, 0
      %p107 = por %p105, %p106
      %s109 = sadd.s32 %s108, 1
      %p112 = scmp.eq.s32.totalorder %s11, 4
      %p113 = scmp.ne.s32.totalorder %s108, %s110
      %p114 = scmp.eq.s32.totalorder %s11, 0
      %p115 = por %p113, %p114
      %p116 = scmp.ne.s32.totalorder %s108, %s110
      %p117 = scmp.eq.s32.totalorder %s16, 4
      %p118 = por %p116, %p117
      %p119 = scmp.ne.s32.totalorder %s110, %s111
      %p120 = scmp.eq.s32.totalorder %s16, 0
      %p121 = por %p119, %p120
      %p122 = scmp.ne.s32.totalorder %s110, %s111
      %p123 = scmp.eq.s32.totalorder %s17, 4
      %p124 = por %p122, %p123
      %p126 = scmp.ne.s32.totalorder %s111, %s125
      %p127 = scmp.eq.s32.totalorder %s17, 0
      %p128 = por %p126, %p127
      %s129 = ssub.s32 %s11, %s18
      %p130 = scmp.eq.s32.totalorder %s129, 0
      %s132 = sadd.s32 %s131, 1
      %s133 = scalar_select %p130, %s131, %s132
      %p136 = pneg %p130
      %p137 = scmp.eq.s32.totalorder %s11, 4
      %p138 = por %p136, %p137
      %p139 = scmp.ne.s32.totalorder %s131, %s134
      %p140 = scmp.eq.s32.totalorder %s11, 0
      %p141 = por %p139, %p140
      %p142 = scmp.ne.s32.totalorder %s131, %s134
      %p143 = scmp.eq.s32.totalorder %s16, 4
      %p144 = por %p142, %p143
      %p145 = scmp.ne.s32.totalorder %s134, %s135
      %p146 = scmp.eq.s32.totalorder %s16, 0
      %p147 = por %p145, %p146
      %p148 = scmp.ne.s32.totalorder %s134, %s135
      %p149 = scmp.eq.s32.totalorder %s17, 4
      %p150 = por %p148, %p149
      %p152 = scmp.ne.s32.totalorder %s135, %s151
      %p153 = scmp.eq.s32.totalorder %s17, 0
      %p154 = por %p152, %p153
      %p155 = scmp.le.s32.totalorder 1, %s11
      %p156 = scmp.lt.s32.totalorder %s11, 6
      %p157 = pnand %p155, %p156
      %p158 = pneg %p157
      // Predicated region
      $region9: #{rgb_atten_fc.1} parent=5 // pred_check
        _
      $region10: #{rgb_atten_fc.1} parent=5 // pred_check_branch
        %160 = sbr.rel (%p157) target = $region12
      $region11: #{rgb_atten_fc.1} parent=5 // pred_region
        %s161 = ssub.s32 %s11, 1
        // Predicated region
        $region13: #{rgb_atten_fc.1} parent=11 // pred_check
          %p162 = pneg %p58
        $region14: #{rgb_atten_fc.1} parent=11 // pred_check_branch
          %164 = sbr.rel (%p162) target = $region16
        $region15: #{rgb_atten_fc.1} parent=11 // pred_region
          _
        $region16: #{rgb_atten_fc.1} parent=11 // pred_fallthru
          _
        // Predicated region
        $region17: #{rgb_atten_fc.1} parent=11 // pred_check
          %p165 = pneg %p79
        $region18: #{rgb_atten_fc.1} parent=11 // pred_check_branch
          %167 = sbr.rel (%p165) target = $region20
        $region19: #{rgb_atten_fc.1} parent=11 // pred_region
          _
        $region20: #{rgb_atten_fc.1} parent=11 // pred_fallthru
          _
        // Predicated region
        $region21: #{rgb_atten_fc.1} parent=11 // pred_check
          %p168 = pneg %p100
        $region22: #{rgb_atten_fc.1} parent=11 // pred_check_branch
          %170 = sbr.rel (%p168) target = $region24
        $region23: #{rgb_atten_fc.1} parent=11 // pred_region
          _
        $region24: #{rgb_atten_fc.1} parent=11 // pred_fallthru
          _
        // Predicated region
        $region25: #{rgb_atten_fc.1} parent=11 // pred_check
          %p171 = pneg %p121
        $region26: #{rgb_atten_fc.1} parent=11 // pred_check_branch
          %173 = sbr.rel (%p171) target = $region28
        $region27: #{rgb_atten_fc.1} parent=11 // pred_region
          _
        $region28: #{rgb_atten_fc.1} parent=11 // pred_fallthru
          _
      $region12: #{rgb_atten_fc.1} parent=5 // pred_fallthru
        _
      %p174 = scmp.lt.s32.totalorder %s11, 5
      // Predicated region
      $region29: #{rgb_atten_fc.1} parent=5 // pred_check
        %p175 = pneg %p174
      $region30: #{rgb_atten_fc.1} parent=5 // pred_check_branch
        %177 = sbr.rel (%p175) target = $region32
      $region31: #{rgb_atten_fc.1} parent=5 // pred_region
        // Predicated region
        $region33: #{rgb_atten_fc.1} parent=31 // pred_check
          %p178 = pneg %p31
        $region34: #{rgb_atten_fc.1} parent=31 // pred_check_branch
          %180 = sbr.rel (%p178) target = $region36
        $region35: #{rgb_atten_fc.1} parent=31 // pred_region
          %s181 = smul.u32 3, %s11
          %s182 = ssub.s32 13, %s181
          %p183 = scmp.lt.s32.totalorder %s182, 3
          %s184 = scalar_select %p183, %s182, 3
          %s185 = smul.u32 4, %s184
          %p186 = scmp.lt.s32.totalorder %s181, 12
          %s187 = scalar_select %p186, %s181, 12
          %s188 = smul.addr %s187, 4
          %s189 = scalar_lea.vmem %s0, %s188
          %s190 = smul.u32 3, %s11
          %s191 = ssub.s32 13, %s190
          %p192 = scmp.lt.s32.totalorder %s191, 3
          %s193 = scalar_select %p192, %s191, 3
          %s194 = smul.u32 4, %s193
        $region36: #{rgb_atten_fc.1} parent=31 // pred_fallthru
          _
      $region32: #{rgb_atten_fc.1} parent=5 // pred_fallthru
        _
      %p195 = scmp.le.s32.totalorder 1, %s11
      %p196 = scmp.lt.s32.totalorder %s11, 6
      %p197 = pnand %p195, %p196
      %p198 = pneg %p197
      // Predicated region
      $region37: #{rgb_atten_fc.1} parent=5 // pred_check
        _
      $region38: #{rgb_atten_fc.1} parent=5 // pred_check_branch
        %200 = sbr.rel (%p197) target = $region40
      $region39: #{rgb_atten_fc.1} parent=5 // pred_region
        %s201 = ssub.s32 %s11, 1
        %s202 = smul.u32 3, %s16
        %s203 = ssub.s32 13, %s202
        %p204 = scmp.lt.s32.totalorder %s203, 3
        %s205 = scalar_select %p204, %s203, 3
        %s206 = smul.u32 4, %s205
        %p207 = scmp.lt.s32.totalorder %s202, 12
        %s208 = scalar_select %p207, %s202, 12
        %s209 = smul.addr %s208, 4
        %s210 = scalar_lea.vmem %s0, %s209
        %p211 = pneg %p37
        %p212 = pneg %p34
        %p213 = pneg %p58
        %p214 = pneg %p55
        %p215 = pneg %p79
        %p216 = pneg %p76
        %p217 = pneg %p100
        %p218 = pneg %p97
        %p219 = pneg %p121
        %p220 = pneg %p118
        %p221 = pneg %p147
        %p222 = pneg %p144
        %s223 = sand.u32 %s134, 1
        %s224 = sand.u32 %s134, 1
        %s225 = smul.addr %s224, 12
        %s226 = scalar_lea.vmem [#allocation2], %s225
        %s227 = smul.u32 3, %s16
        %s228 = ssub.s32 13, %s227
        %p229 = scmp.lt.s32.totalorder %s228, 3
        %s230 = scalar_select %p229, %s228, 3
        %s231 = smul.u32 4, %s230
        %p232 = scmp.lt.s32.totalorder %s227, 12
        %s233 = scalar_select %p232, %s227, 12
        %s234 = smul.addr %s233, 4
        %s235 = scalar_lea.vmem %s0, %s234
        %s236 = smul.u32 3, %s16
        %s237 = ssub.s32 13, %s236
        %p238 = scmp.lt.s32.totalorder %s237, 3
        %s239 = scalar_select %p238, %s237, 3
        %s240 = smul.u32 4, %s239
        %s241 = smul.u32 3, %s16
        %s242 = ssub.s32 13, %s241
        %p243 = scmp.lt.s32.totalorder %s242, 3
        %s244 = scalar_select %p243, %s242, 3
        %s245 = smul.u32 4, %s244
        %v246 = vld [vmem:[%s235] sm:$0xf]
        %v247 = vld [vmem:[%s235 + $0x4] sm:$0xf]
        %v248 = vld [vmem:[%s235 + $0x8] sm:$0xf]
        %v249 = vld [vmem:[%s1] sm:$0xf]
        %v250 = vld [vmem:[%s1 + $0x4] sm:$0xf]
        %v251 = vld [vmem:[%s1 + $0x8] sm:$0xf]
        %v252 = vld [vmem:[%s1 + $0xc] sm:$0xf]
        %v253 = vld [vmem:[%s1 + $0x10] sm:$0xf]
        %v254 = vld [vmem:[%s1 + $0x14] sm:$0xf]
        %v255 = vld [vmem:[%s1 + $0x18] sm:$0xf]
        %v256 = vld [vmem:[%s1 + $0x1c] sm:$0xf]
        %v257 = vld [vmem:[%s1 + $0x20] sm:$0xf]
        %v258 = vld [vmem:[%s1 + $0x24] sm:$0xf]
        %v259 = vld [vmem:[%s1 + $0x28] sm:$0xf]
        %v260 = vld [vmem:[%s1 + $0x2c] sm:$0xf]
        %v261 = vld [vmem:[%s1 + $0x30] sm:$0xf]
        %v262 = vld [vmem:[%s1 + $0x34] sm:$0xf]
        %v263 = vld [vmem:[%s1 + $0x38] sm:$0xf]
        %v264 = vld [vmem:[%s1 + $0x3c] sm:$0xf]
        %v265 = vld [vmem:[%s2] sm:$0x1]
        %v267 = vperm.slane %v265, 0
        %v272 = vunpack.c.l.b16 %v246
        %v273 = vunpack.c.l.b16 %v247
        %v274 = vunpack.c.l.b16 %v248
        %v275 = vpack.c.b16 %v273, %v272
        %v276 = vpack.c.b16 %v274, %v274
        %v295 = vunpack.c.l.b16 %v249
        %v296 = vunpack.c.l.b16 %v250
        %v297 = vunpack.c.l.b16 %v251
        %v298 = vunpack.c.l.b16 %v252
        %v299 = vunpack.c.l.b16 %v253
        %v300 = vunpack.c.l.b16 %v254
        %v301 = vunpack.c.l.b16 %v255
        %v302 = vunpack.c.l.b16 %v256
        %v303 = vunpack.c.l.b16 %v257
        %v304 = vunpack.c.l.b16 %v258
        %v305 = vunpack.c.l.b16 %v259
        %v306 = vunpack.c.l.b16 %v260
        %v307 = vunpack.c.l.b16 %v261
        %v308 = vunpack.c.l.b16 %v262
        %v309 = vunpack.c.l.b16 %v263
        %v310 = vunpack.c.l.b16 %v264
        %v311 = vpack.c.b16 %v296, %v295
        %v312 = vpack.c.b16 %v298, %v297
        %v313 = vpack.c.b16 %v300, %v299
        %v314 = vpack.c.b16 %v302, %v301
        %v315 = vpack.c.b16 %v304, %v303
        %v316 = vpack.c.b16 %v306, %v305
        %v317 = vpack.c.b16 %v308, %v307
        %v318 = vpack.c.b16 %v310, %v309
        %327 = vmatpush.bf16.msra.mxu0 %v318
        %328 = vmatpush.bf16.msra.mxu0 %v317
        %329 = vmatpush.bf16.msra.mxu0 %v316
        %330 = vmatpush.bf16.msra.mxu0 %v315
        %331 = vmatpush.bf16.msra.mxu0 %v314
        %332 = vmatpush.bf16.msra.mxu0 %v313
        %333 = vmatpush.bf16.msra.mxu0 %v312
        %334 = vmatpush.bf16.msra.mxu0 %v311
        %335 = vmatmul.bf16.gmra.mxu0 %v275
        %v336 = vpop.f32.mrf.mxu0
        %v337 = vadd.f32 %v267, %v336
        %v338 = vpop.f32.mrf.mxu0
        %v339 = vadd.f32 %v267, %v338
        %340 = vmatmul.bf16.gmra.mxu0 %v276
        %v341 = vpop.f32.mrf.mxu0
        %v342 = vadd.f32 %v267, %v341
        %v343 = vpop.f32.mrf.mxu0
        %344 = vdwg.mxu0
        %v345 = vmax.f32 %v337, 0.0
        %v346 = vmax.f32 %v339, 0.0
        %v347 = vmax.f32 %v342, 0.0
        %v348 = vpack.c.bf16 %v346, %v345
        %v349 = vpack.c.bf16 %v347, %v347
        %v350 = vld [vmem:[%s3] sm:$0xf]
        %v351 = vld [vmem:[%s3 + $0x4] sm:$0xf]
        %v352 = vld [vmem:[%s3 + $0x8] sm:$0xf]
        %v353 = vld [vmem:[%s3 + $0xc] sm:$0xf]
        %v354 = vld [vmem:[%s3 + $0x10] sm:$0xf]
        %v355 = vld [vmem:[%s3 + $0x14] sm:$0xf]
        %v356 = vld [vmem:[%s3 + $0x18] sm:$0xf]
        %v357 = vld [vmem:[%s3 + $0x1c] sm:$0xf]
        %v358 = vld [vmem:[%s3 + $0x20] sm:$0xf]
        %v359 = vld [vmem:[%s3 + $0x24] sm:$0xf]
        %v360 = vld [vmem:[%s3 + $0x28] sm:$0xf]
        %v361 = vld [vmem:[%s3 + $0x2c] sm:$0xf]
        %v362 = vld [vmem:[%s3 + $0x30] sm:$0xf]
        %v363 = vld [vmem:[%s3 + $0x34] sm:$0xf]
        %v364 = vld [vmem:[%s3 + $0x38] sm:$0xf]
        %v365 = vld [vmem:[%s3 + $0x3c] sm:$0xf]
        %v366 = vld [vmem:[%s4] sm:$0x1]
        %v368 = vperm.slane %v366, 0
        %v386 = vunpack.c.l.b16 %v350
        %v387 = vunpack.c.l.b16 %v351
        %v388 = vunpack.c.l.b16 %v352
        %v389 = vunpack.c.l.b16 %v353
        %v390 = vunpack.c.l.b16 %v354
        %v391 = vunpack.c.l.b16 %v355
        %v392 = vunpack.c.l.b16 %v356
        %v393 = vunpack.c.l.b16 %v357
        %v394 = vunpack.c.l.b16 %v358
        %v395 = vunpack.c.l.b16 %v359
        %v396 = vunpack.c.l.b16 %v360
        %v397 = vunpack.c.l.b16 %v361
        %v398 = vunpack.c.l.b16 %v362
        %v399 = vunpack.c.l.b16 %v363
        %v400 = vunpack.c.l.b16 %v364
        %v401 = vunpack.c.l.b16 %v365
        %v402 = vpack.c.b16 %v387, %v386
        %v403 = vpack.c.b16 %v389, %v388
        %v404 = vpack.c.b16 %v391, %v390
        %v405 = vpack.c.b16 %v393, %v392
        %v406 = vpack.c.b16 %v395, %v394
        %v407 = vpack.c.b16 %v397, %v396
        %v408 = vpack.c.b16 %v399, %v398
        %v409 = vpack.c.b16 %v401, %v400
        %418 = vmatpush.bf16.msra.mxu0 %v409
        %419 = vmatpush.bf16.msra.mxu0 %v408
        %420 = vmatpush.bf16.msra.mxu0 %v407
        %421 = vmatpush.bf16.msra.mxu0 %v406
        %422 = vmatpush.bf16.msra.mxu0 %v405
        %423 = vmatpush.bf16.msra.mxu0 %v404
        %424 = vmatpush.bf16.msra.mxu0 %v403
        %425 = vmatpush.bf16.msra.mxu0 %v402
        %426 = vmatmul.bf16.gmra.mxu0 %v348
        %v427 = vpop.f32.mrf.mxu0
        %v428 = vadd.f32 %v368, %v427
        %v429 = vpop.f32.mrf.mxu0
        %v430 = vadd.f32 %v368, %v429
        %431 = vmatmul.bf16.gmra.mxu0 %v349
        %v432 = vpop.f32.mrf.mxu0
        %v433 = vadd.f32 %v368, %v432
        %v434 = vpop.f32.mrf.mxu0
        %435 = vdwg.mxu0
        %v436 = vxor.u32 %v428, 2147483648
        %v437 = vxor.u32 %v430, 2147483648
        %v438 = vxor.u32 %v433, 2147483648
        %v439 = vmul.f32 %v436, 1.442695
        %v440 = vpow.pop %v439
        %v441 = vmul.f32 %v437, 1.442695
        %v442 = vpow.pop %v441
        %v443 = vmul.f32 %v438, 1.442695
        %v444 = vpow.pop %v443
        %v445 = vadd.f32 %v440, 1.0
        %v446 = vadd.f32 %v442, 1.0
        %v447 = vadd.f32 %v444, 1.0
        %v448 = vrcp.pop %v445
        %v449 = vmul.f32 %v445, %v448
        %v450 = vsub.f32 1.0, %v449
        %v451 = vmul.f32 %v448, %v450
        %v452 = vadd.f32 %v448, %v451
        %vm453 = vweird.f32 %v445
        %vm454 = vweird.f32 %v448
        %vm455 = vmor %vm453, %vm454
        %v456 = vsel %vm455, %v448, %v452
        %v457 = vand.u32 2147483647, %v445
        %vm458 = vcmp.eq.f32.partialorder %v457, 8.507059e+37
        %v459 = vand.u32 %v445, 2147483648
        %v460 = vor.u32 1.1754944e-38, %v459
        %v461 = vsel %vm458, %v460, %v456
        %v462 = vmul.f32 1.0, %v461
        %v463 = vrcp.pop %v446
        %v464 = vmul.f32 %v446, %v463
        %v465 = vsub.f32 1.0, %v464
        %v466 = vmul.f32 %v463, %v465
        %v467 = vadd.f32 %v463, %v466
        %vm468 = vweird.f32 %v446
        %vm469 = vweird.f32 %v463
        %vm470 = vmor %vm468, %vm469
        %v471 = vsel %vm470, %v463, %v467
        %v472 = vand.u32 2147483647, %v446
        %vm473 = vcmp.eq.f32.partialorder %v472, 8.507059e+37
        %v474 = vand.u32 %v446, 2147483648
        %v475 = vor.u32 1.1754944e-38, %v474
        %v476 = vsel %vm473, %v475, %v471
        %v477 = vmul.f32 1.0, %v476
        %v478 = vrcp.pop %v447
        %v479 = vmul.f32 %v447, %v478
        %v480 = vsub.f32 1.0, %v479
        %v481 = vmul.f32 %v478, %v480
        %v482 = vadd.f32 %v478, %v481
        %vm483 = vweird.f32 %v447
        %vm484 = vweird.f32 %v478
        %vm485 = vmor %vm483, %vm484
        %v486 = vsel %vm485, %v478, %v482
        %v487 = vand.u32 2147483647, %v447
        %vm488 = vcmp.eq.f32.partialorder %v487, 8.507059e+37
        %v489 = vand.u32 %v447, 2147483648
        %v490 = vor.u32 1.1754944e-38, %v489
        %v491 = vsel %vm488, %v490, %v486
        %v492 = vmul.f32 1.0, %v491
        %v493 = vpack.c.bf16 %v462, %v462
        %v494 = vpack.c.bf16 %v477, %v477
        %v495 = vpack.c.bf16 %v492, %v492
        %496 = vst [vmem:[%s226] sm:$0xf] %v493
        %497 = vst [vmem:[%s226 + $0x4] sm:$0xf] %v494
        %498 = vst [vmem:[%s226 + $0x8] sm:$0xf] %v495
        %s499 = sand.u32 %s134, 1
        %s500 = sand.u32 %s134, 1
        %s501 = smul.addr %s500, 12
        %s502 = scalar_lea.vmem [#allocation2], %s501
        // Predicated region
        $region41: #{rgb_atten_fc.1} parent=39 // pred_check
          %p503 = pneg %p144
        $region42: #{rgb_atten_fc.1} parent=39 // pred_check_branch
          %505 = sbr.rel (%p503) target = $region44
        $region43: #{rgb_atten_fc.1} parent=39 // pred_region
          %s506 = smul.u32 3, %s16
          %s507 = ssub.s32 13, %s506
          %p508 = scmp.lt.s32.totalorder %s507, 3
          %s509 = scalar_select %p508, %s507, 3
          %s510 = smul.u32 4, %s509
          %p511 = scmp.ne.s32.totalorder 0, %s510
          %s512 = smul.addr %s506, 4
          %s513 = scalar_lea.vmem %s5, %s512
          // Predicated region
          $region45: #{rgb_atten_fc.1} parent=43 // pred_check
            %p514 = pneg %p511
          $region46: #{rgb_atten_fc.1} parent=43 // pred_check_branch
            %516 = sbr.rel (%p514) target = $region48
          $region47: #{rgb_atten_fc.1} parent=43 // pred_region
            // Predicated region
            $region49: #{rgb_atten_fc.1} parent=47 // pred_check
              _
            $region50: #{rgb_atten_fc.1} parent=47 // pred_check_branch
              %518 = sbr.rel target = $region52
            $region51: #{rgb_atten_fc.1} parent=47 // pred_region
              // Predicated region
              $region71: #{rgb_atten_fc.1} parent=51 // pred_check
                _
              $region72: #{rgb_atten_fc.1} parent=51 // pred_check_branch
                %573 = sbr.rel (0) target = $region74
              $region73: #{rgb_atten_fc.1} parent=51 // pred_region
                %s575 = ssub.s32 16, 1
                %s576 = sdiv.u32.pop %s509, 3
                %s577 = srem.u32.pop %s509, 3
                // While loop
                $region75: #{rgb_atten_fc.1} parent=73 // loop_pre_header
                  _
                $region76: #{rgb_atten_fc.1} parent=73 // loop_header
                  %s579 = sphi 0, %s581
                  %p580 = scmp.ge.s32.totalorder %s579, %s576
                  %s584 = sphi 0, %s595
                  %s585 = sphi %s502, %s598
                  %s586 = sphi %s513, %s599
                $region77: #{rgb_atten_fc.1} parent=73 // loop_header_branch
                  %583 = sbr.rel (%p580) target = $region81
                $region78: #{rgb_atten_fc.1} parent=73 // loop_body
                  %v587 = vld [vmem:[%s585] sm:%s575]
                  %588 = vst [vmem:[%s586] sm:%s575] %v587
                  %v589 = vld [vmem:[%s585 + $0x4] sm:%s575]
                  %590 = vst [vmem:[%s586 + $0x4] sm:%s575] %v589
                  %v591 = vld [vmem:[%s585 + $0x8] sm:%s575]
                  %592 = vst [vmem:[%s586 + $0x8] sm:%s575] %v591
                  %s593 = sadd.s32 1, %s584
                  %p594 = scmp.ge.s32.totalorder %s593, %s576
                  %s595 = scalar_select %p594, 0, %s593
                  %s596 = smul.u32 %s595, 12
                  %s597 = smul.u32 %s595, 12
                  %s598 = scalar_lea.vmem %s502, %s596 [#allocation2]
                  %s599 = scalar_lea.vmem %s513, %s597
                $region79: #{rgb_atten_fc.1} parent=73 // loop_footer
                  %s581 = sadd.s32 %s579, 1
                $region80: #{rgb_atten_fc.1} parent=73 // loop_footer_branch
                  %578 = sbr.rel target = $region76
                $region81: #{rgb_atten_fc.1} parent=73 // loop_exit
                  _
                %s600 = sdiv.u32.pop %s509, 3
                %s601 = srem.u32.pop %s509, 3
                %s602 = smul.u32 %s600, 3
                %s603 = smul.u32 4, %s602
                %s604 = scalar_lea.vmem %s502, %s603 [#allocation2]
                %s605 = smul.u32 4, %s602
                %s606 = scalar_lea.vmem %s513, %s605
                // While loop
                $region82: #{rgb_atten_fc.1} parent=73 // loop_pre_header
                  _
                $region83: #{rgb_atten_fc.1} parent=73 // loop_header
                  %s608 = sphi 0, %s610
                  %p609 = scmp.ge.s32.totalorder %s608, %s601
                  %s613 = sphi 0, %s620
                  %s614 = sphi %s604, %s623
                  %s615 = sphi %s606, %s624
                $region84: #{rgb_atten_fc.1} parent=73 // loop_header_branch
                  %612 = sbr.rel (%p609) target = $region88
                $region85: #{rgb_atten_fc.1} parent=73 // loop_body
                  %v616 = vld [vmem:[%s614] sm:%s575]
                  %617 = vst [vmem:[%s615] sm:%s575] %v616
                  %s618 = sadd.s32 1, %s613
                  %p619 = scmp.ge.s32.totalorder %s618, %s601
                  %s620 = scalar_select %p619, 0, %s618
                  %s621 = smul.u32 %s620, 4
                  %s622 = smul.u32 %s620, 4
                  %s623 = scalar_lea.vmem %s604, %s621 [#allocation2]
                  %s624 = scalar_lea.vmem %s606, %s622
                $region86: #{rgb_atten_fc.1} parent=73 // loop_footer
                  %s610 = sadd.s32 %s608, 1
                $region87: #{rgb_atten_fc.1} parent=73 // loop_footer_branch
                  %607 = sbr.rel target = $region83
                $region88: #{rgb_atten_fc.1} parent=73 // loop_exit
                  _
              $region74: #{rgb_atten_fc.1} parent=51 // pred_fallthru
                _
            $region52: #{rgb_atten_fc.1} parent=47 // pred_fallthru
              _
            // Predicated region
            $region53: #{rgb_atten_fc.1} parent=47 // pred_check
              _
            $region54: #{rgb_atten_fc.1} parent=47 // pred_check_branch
              %520 = sbr.rel (0) target = $region56
            $region55: #{rgb_atten_fc.1} parent=47 // pred_region
              %s522 = ssub.s32 16, 1
              %s523 = sdiv.u32.pop %s509, 3
              %s524 = srem.u32.pop %s509, 3
              // While loop
              $region57: #{rgb_atten_fc.1} parent=55 // loop_pre_header
                _
              $region58: #{rgb_atten_fc.1} parent=55 // loop_header
                %s526 = sphi 0, %s528
                %p527 = scmp.ge.s32.totalorder %s526, %s523
                %s531 = sphi 0, %s542
                %s532 = sphi %s502, %s545
                %s533 = sphi %s513, %s546
              $region59: #{rgb_atten_fc.1} parent=55 // loop_header_branch
                %530 = sbr.rel (%p527) target = $region63
              $region60: #{rgb_atten_fc.1} parent=55 // loop_body
                %v534 = vld [vmem:[%s532] sm:%s522]
                %535 = vst [vmem:[%s533] sm:%s522] %v534
                %v536 = vld [vmem:[%s532 + $0x4] sm:%s522]
                %537 = vst [vmem:[%s533 + $0x4] sm:%s522] %v536
                %v538 = vld [vmem:[%s532 + $0x8] sm:%s522]
                %539 = vst [vmem:[%s533 + $0x8] sm:%s522] %v538
                %s540 = sadd.s32 1, %s531
                %p541 = scmp.ge.s32.totalorder %s540, %s523
                %s542 = scalar_select %p541, 0, %s540
                %s543 = smul.u32 %s542, 12
                %s544 = smul.u32 %s542, 12
                %s545 = scalar_lea.vmem %s502, %s543 [#allocation2]
                %s546 = scalar_lea.vmem %s513, %s544
              $region61: #{rgb_atten_fc.1} parent=55 // loop_footer
                %s528 = sadd.s32 %s526, 1
              $region62: #{rgb_atten_fc.1} parent=55 // loop_footer_branch
                %525 = sbr.rel target = $region58
              $region63: #{rgb_atten_fc.1} parent=55 // loop_exit
                _
              %s547 = sdiv.u32.pop %s509, 3
              %s548 = srem.u32.pop %s509, 3
              %s549 = smul.u32 %s547, 3
              %s550 = smul.u32 4, %s549
              %s551 = scalar_lea.vmem %s502, %s550 [#allocation2]
              %s552 = smul.u32 4, %s549
              %s553 = scalar_lea.vmem %s513, %s552
              // While loop
              $region64: #{rgb_atten_fc.1} parent=55 // loop_pre_header
                _
              $region65: #{rgb_atten_fc.1} parent=55 // loop_header
                %s555 = sphi 0, %s557
                %p556 = scmp.ge.s32.totalorder %s555, %s548
                %s560 = sphi 0, %s567
                %s561 = sphi %s551, %s570
                %s562 = sphi %s553, %s571
              $region66: #{rgb_atten_fc.1} parent=55 // loop_header_branch
                %559 = sbr.rel (%p556) target = $region70
              $region67: #{rgb_atten_fc.1} parent=55 // loop_body
                %v563 = vld [vmem:[%s561] sm:%s522]
                %564 = vst [vmem:[%s562] sm:%s522] %v563
                %s565 = sadd.s32 1, %s560
                %p566 = scmp.ge.s32.totalorder %s565, %s548
                %s567 = scalar_select %p566, 0, %s565
                %s568 = smul.u32 %s567, 4
                %s569 = smul.u32 %s567, 4
                %s570 = scalar_lea.vmem %s551, %s568 [#allocation2]
                %s571 = scalar_lea.vmem %s553, %s569
              $region68: #{rgb_atten_fc.1} parent=55 // loop_footer
                %s557 = sadd.s32 %s555, 1
              $region69: #{rgb_atten_fc.1} parent=55 // loop_footer_branch
                %554 = sbr.rel target = $region65
              $region70: #{rgb_atten_fc.1} parent=55 // loop_exit
                _
            $region56: #{rgb_atten_fc.1} parent=47 // pred_fallthru
              _
          $region48: #{rgb_atten_fc.1} parent=43 // pred_fallthru
            _
          %625 = vnop
        $region44: #{rgb_atten_fc.1} parent=39 // pred_fallthru
          _
      $region40: #{rgb_atten_fc.1} parent=5 // pred_fallthru
        _
      %p626 = scmp.le.s32.totalorder 2, %s11
      // Predicated region
      $region89: #{rgb_atten_fc.1} parent=5 // pred_check
        %p627 = pneg %p626
      $region90: #{rgb_atten_fc.1} parent=5 // pred_check_branch
        %629 = sbr.rel (%p627) target = $region92
      $region91: #{rgb_atten_fc.1} parent=5 // pred_region
        %s630 = ssub.s32 %s11, 2
        // Predicated region
        $region93: #{rgb_atten_fc.1} parent=91 // pred_check
          %p631 = pneg %p150
        $region94: #{rgb_atten_fc.1} parent=91 // pred_check_branch
          %633 = sbr.rel (%p631) target = $region96
        $region95: #{rgb_atten_fc.1} parent=91 // pred_region
          %s634 = sand.u32 %s135, 1
          %s635 = sand.u32 %s135, 1
          %s636 = smul.addr %s635, 12
          %s637 = scalar_lea.vmem [#allocation2], %s636
        $region96: #{rgb_atten_fc.1} parent=91 // pred_fallthru
          _
      $region92: #{rgb_atten_fc.1} parent=5 // pred_fallthru
        _
    $region6: #{rgb_atten_fc.1} parent=1 // loop_footer
      %s15 = sadd.s32 1, %s11
    $region7: #{rgb_atten_fc.1} parent=1 // loop_footer_branch
      %10 = sbr.rel target = $region3
    $region8: #{rgb_atten_fc.1} parent=1 // loop_exit
      _

</llo_original>
